<compile_context>
chip_gen: v5e
topology: v5e:2x2
jax: 0.10.0
libtpu: 0.0.40
codegen_flags: <defaults>
</compile_context>

<pallas_src>
import functools

import jax
import jax.numpy as jnp
from jax.experimental import pallas as pl
from jax.experimental.pallas import tpu as pltpu

EPS = 1e-8
_LANES = 128
_TILE_BYTES = 4 * 1024 * 1024  # ~4 MiB per input stream per tile


def _cdiv(a, b):
    return -(-a // b)


@functools.lru_cache(maxsize=1)
def _num_tensorcores():
    """Best-effort TensorCore count (v7x has 2); fall back to 1."""
    try:
        info = pltpu.get_tpu_info()
    except Exception:
        return 1
    for name in ("num_tensorcores", "tensorcore_count", "num_cores",
                 "cores_per_chip", "core_count"):
        v = getattr(info, name, None)
        if isinstance(v, int) and v >= 1:
            return v
    return 1


def _static_pow(base, p, tdtype):
    """base ** p for a trace-time-known power, avoiding exp/log when possible."""
    p = float(p)
    if p == 0.0:
        return jnp.ones_like(base)
    k = int(p)
    frac = p - k
    if p > 0.0 and k <= 8 and frac in (0.0, 0.5):
        out = jnp.sqrt(base) if frac == 0.5 else None  # single EUP op
        for _ in range(k):                              # cheap VPU multiplies
            out = base if out is None else out * base
        return out
    # General fractional power: exp(p * log(base)) on the EUP.  tdtype=bfloat16
    # halves EUP cost on v6e/v7x (opt-in; default keeps full f32 accuracy).
    b = base.astype(tdtype)
    return jnp.exp(jnp.asarray(p, tdtype) * jnp.log(b)).astype(jnp.float32)


def _transcendentals_per_elem(mode, p_static):
    if mode != "static":
        return 2
    p = float(p_static)
    if p == 0.0:
        return 0
    k = int(p)
    frac = p - k
    if p > 0.0 and k <= 8:
        if frac == 0.0:
            return 0
        if frac == 0.5:
            return 1
    return 2


def _make_power_fn(mode, p_static, tdtype):
    if mode == "static":
        return lambda base, power_ref: _static_pow(base, p_static, tdtype)

    def dyn(base, power_ref):
        p = power_ref[0]                 # SMEM scalar
        b = base.astype(tdtype)
        return jnp.exp(p.astype(tdtype) * jnp.log(b)).astype(jnp.float32)

    return dyn


def _make_sum_kernel(power_fn, dyn, n_inner, n_tiles, acc_rows, has_dup):
    def body(power_ref, x_ref, y_ref, out_ref):
        i = pl.program_id(0)   # outer: "parallel" (megacore split on v7x)
        j = pl.program_id(1)   # inner: "arbitrary" (reduction axis)

        @pl.when(j == 0)
        def _init():
            out_ref[...] = jnp.zeros_like(out_ref)

        def compute_and_accum():
            xv = x_ref[...].astype(jnp.float32)
            yv = y_ref[...].astype(jnp.float32)
            base = jnp.abs(xv - yv) + jnp.float32(EPS)
            val = power_fn(base, power_ref)
            # Wide resident accumulator: acc_rows independent VPU add chains,
            # no cross-lane / masked work in the hot loop.
            out_ref[...] += val.reshape(-1, acc_rows, _LANES).sum(axis=0)

        if has_dup:
            # Only the last grid point of the second core can be a duplicate
            # (odd tile count); it is DMA'd but skipped.
            pl.when(i * n_inner + j < n_tiles)(compute_and_accum)
        else:
            compute_and_accum()

    if dyn:
        return body
    return lambda x_ref, y_ref, out_ref: body(None, x_ref, y_ref, out_ref)


def _make_elem_kernel(power_fn, dyn, out_dtype):
    def body(power_ref, x_ref, y_ref, o_ref):
        xv = x_ref[...].astype(jnp.float32)
        yv = y_ref[...].astype(jnp.float32)
        base = jnp.abs(xv - yv) + jnp.float32(EPS)
        o_ref[...] = power_fn(base, power_ref).astype(out_dtype)

    if dyn:
        return body
    return lambda x_ref, y_ref, o_ref: body(None, x_ref, y_ref, o_ref)


def _jnp_fallback(x, y, power, reduction, out_dtype):
    # One fused XLA elementwise(+reduce) pass: already HBM-roofline optimal for
    # the shapes that can't use the zero-copy (rows, 128) kernel layout.
    base = jnp.abs(x.astype(jnp.float32) - y.astype(jnp.float32)) + jnp.float32(EPS)
    ret = base ** power
    if reduction == "none":
        return ret.astype(out_dtype)
    red = jnp.mean(ret) if reduction == "mean" else jnp.sum(ret)
    return red.astype(out_dtype)


def l0_loss(x, y, current_epoch, total_epoch, reduction="mean",
            transcendental_dtype=jnp.float32):
    """Forward pass of L0_Loss: (|x - y| + eps) ** (2*(T - c)/T), then reduce."""
    # ---- power specialization (trace time when epochs are Python scalars) ----
    if isinstance(current_epoch, (int, float)) and isinstance(total_epoch, (int, float)):
        mode = "static"
        p_static = 2.0 * (float(total_epoch) - float(current_epoch)) / float(total_epoch)
        power_scalar = p_static
        power_arr = None
    else:
        mode = "dynamic"
        p_static = None
        power_scalar = (2.0 * (jnp.asarray(total_epoch, jnp.float32)
                               - jnp.asarray(current_epoch, jnp.float32))
                        / jnp.asarray(total_epoch, jnp.float32))
        power_arr = power_scalar.reshape(1).astype(jnp.float32)

    out_dtype = jnp.result_type(x.dtype, y.dtype)
    if not jnp.issubdtype(out_dtype, jnp.floating):
        out_dtype = jnp.float32

    orig_shape = x.shape
    n = int(x.size)

    # The kernel path requires a zero-copy lane-dense (rows, 128) view.
    if n == 0 or n % _LANES != 0 or (n // _LANES) < 8:
        return _jnp_fallback(x, y, power_scalar, reduction, out_dtype)

    rows = n // _LANES
    xf = x.reshape(rows, _LANES)   # free bitcast of a contiguous array
    yf = y.reshape(rows, _LANES)

    xi = jnp.dtype(x.dtype).itemsize
    yi = jnp.dtype(y.dtype).itemsize
    oi = jnp.dtype(out_dtype).itemsize
    # ~4 MiB per input stream per grid step, dtype aware, multiple of 64 rows.
    max_rows = max(64, (_TILE_BYTES // (_LANES * max(xi, yi))) // 64 * 64)

    dyn = (mode == "dynamic")
    power_fn = _make_power_fn(mode, p_static, transcendental_dtype)
    smem_spec = pl.BlockSpec(memory_space=pltpu.SMEM)
    transc = _transcendentals_per_elem(mode, p_static)

    if reduction == "none":
        tile_rows = rows if rows <= max_rows else max_rows
        n_tiles = _cdiv(rows, tile_rows)   # boundary block (if any): OOB reads are
                                           # dead values, OOB writes are dropped
        tile_spec = pl.BlockSpec((tile_rows, _LANES), lambda i: (i, 0))
        in_specs = ([smem_spec] if dyn else []) + [tile_spec, tile_spec]
        args = ((power_arr,) if dyn else ()) + (xf, yf)
        vmem = max(2 * tile_rows * _LANES * (xi + yi + oi) + (8 << 20), 32 << 20)
        cost = pl.CostEstimate(flops=4 * n, transcendentals=transc * n,
                               bytes_accessed=n * (xi + yi + oi))
        out = pl.pallas_call(
            _make_elem_kernel(power_fn, dyn, out_dtype),
            out_shape=jax.ShapeDtypeStruct((rows, _LANES), out_dtype),
            grid=(n_tiles,),
            in_specs=in_specs,
            out_specs=tile_spec,
            compiler_params=pltpu.CompilerParams(
                dimension_semantics=("parallel",),
                vmem_limit_bytes=int(vmem)),
            cost_estimate=cost,
        )(*args)
        return out.reshape(orig_shape)   # free bitcast, no slicing

    # ---- reduction path ('mean' / 'sum') ----
    tile_rows = min(max_rows, (rows // 8) * 8)
    n_tiles = rows // tile_rows            # whole tiles only: no pad, no in-kernel mask
    covered_rows = n_tiles * tile_rows
    acc_rows = 64 if tile_rows % 64 == 0 else 8

    n_outer = 2 if (_num_tensorcores() >= 2 and n_tiles >= 2) else 1
    n_inner = _cdiv(n_tiles, n_outer)
    has_dup = n_outer * n_inner != n_tiles

    if has_dup:
        def in_map(i, j):
            return (jnp.minimum(i * n_inner + j, n_tiles - 1), 0)
    else:
        def in_map(i, j):
            return (i * n_inner + j, 0)

    in_spec = pl.BlockSpec((tile_rows, _LANES), in_map)
    in_specs = ([smem_spec] if dyn else []) + [in_spec, in_spec]
    args = ((power_arr,) if dyn else ()) + (xf, yf)
    vmem = max(2 * tile_rows * _LANES * (xi + yi)
               + 4 * n_outer * acc_rows * _LANES * 4 + (8 << 20), 32 << 20)
    cost = pl.CostEstimate(flops=5 * n, transcendentals=transc * n,
                           bytes_accessed=n * (xi + yi)
                           + n_outer * acc_rows * _LANES * 4)

    partials = pl.pallas_call(
        _make_sum_kernel(power_fn, dyn, n_inner, n_tiles, acc_rows, has_dup),
        out_shape=jax.ShapeDtypeStruct((n_outer * acc_rows, _LANES), jnp.float32),
        grid=(n_outer, n_inner),
        in_specs=in_specs,
        out_specs=pl.BlockSpec((acc_rows, _LANES), lambda i, j: (i, 0)),
        compiler_params=pltpu.CompilerParams(
            dimension_semantics=("parallel", "arbitrary"),
            vmem_limit_bytes=int(vmem)),
        cost_estimate=cost,
    )(*args)

    # Single cheap cross-lane reduce in the wrapper (at most 2 * 64 * 128 f32).
    total = jnp.sum(partials, dtype=jnp.float32)

    if covered_rows < rows:
        # < 1-tile row remainder: one tiny fused jnp pass over the tail slice.
        xt = xf[covered_rows:].astype(jnp.float32)
        yt = yf[covered_rows:].astype(jnp.float32)
        bt = jnp.abs(xt - yt) + jnp.float32(EPS)
        total = total + jnp.sum(bt ** power_scalar, dtype=jnp.float32)

    if reduction == "mean":
        total = total / jnp.float32(n)
    return total.astype(out_dtype)


if __name__ == "__main__":
    key = jax.random.PRNGKey(0)
    kx, ky, ka, kb = jax.random.split(key, 4)
    # Module __init__ only stores scalars; forward takes two like-shaped tensors.
    x = jax.random.normal(kx, (2, 4, 16, 16), dtype=jnp.float32)
    y = jax.random.normal(ky, (2, 4, 16, 16), dtype=jnp.float32)

    total_epoch, current_epoch = 10, 3
    p_ref = 2.0 * (total_epoch - current_epoch) / total_epoch
    ref_elem = (jnp.abs(x - y) + EPS) ** p_ref

    # 'mean' (default)
    out_mean = jax.block_until_ready(l0_loss(x, y, current_epoch, total_epoch, "mean"))
    assert jnp.allclose(out_mean, jnp.mean(ref_elem), rtol=1e-5, atol=1e-6), out_mean

    # 'sum'
    out_sum = jax.block_until_ready(l0_loss(x, y, current_epoch, total_epoch, "sum"))
    assert jnp.allclose(out_sum, jnp.sum(ref_elem), rtol=1e-5, atol=1e-4), out_sum

    # 'none'
    out_none = jax.block_until_ready(l0_loss(x, y, current_epoch, total_epoch, "none"))
    assert out_none.shape == x.shape
    assert jnp.allclose(out_none, ref_elem, rtol=1e-5, atol=1e-6)

    # power == 2.0 (current_epoch == 0): specialized square path (no EUP ops)
    out_sq = jax.block_until_ready(l0_loss(x, y, 0, total_epoch, "mean"))
    ref_sq = jnp.mean((jnp.abs(x - y) + EPS) ** 2.0)
    assert jnp.allclose(out_sq, ref_sq, rtol=1e-5, atol=1e-6), (out_sq, ref_sq)

    # rows not a multiple of the tile: kernel on whole tiles + jnp tail add
    xb = jax.random.normal(ka, (19, 128), dtype=jnp.float32)
    yb = jax.random.normal(kb, (19, 128), dtype=jnp.float32)
    out_b = jax.block_until_ready(l0_loss(xb, yb, current_epoch, total_epoch, "sum"))
    ref_b = jnp.sum((jnp.abs(xb - yb) + EPS) ** p_ref)
    assert jnp.allclose(out_b, ref_b, rtol=1e-5, atol=1e-4), (out_b, ref_b)

    # traced epochs: dynamic power read from SMEM inside the kernel
    out_dyn = jax.block_until_ready(
        l0_loss(x, y, jnp.float32(current_epoch), jnp.float32(total_epoch), "mean"))
    assert jnp.allclose(out_dyn, jnp.mean(ref_elem), rtol=1e-5, atol=1e-6), out_dyn

    # opt-in bf16 transcendentals (EUP lever on v6e/v7x) — loose tolerance
    out_bf = jax.block_until_ready(
        l0_loss(x, y, current_epoch, total_epoch, "mean",
                transcendental_dtype=jnp.bfloat16))
    assert jnp.allclose(out_bf, jnp.mean(ref_elem), rtol=3e-2), out_bf

    print("KERNEL_OK")
</pallas_src>

<mosaic_0001>
module attributes {stable_mosaic.version = 11 : i64} {
  func.func @_lambda_(%arg0: i32, %arg1: i32, %arg2: memref<16x128xf32, #tpu.memory_space<vmem>>, %arg3: memref<16x128xf32, #tpu.memory_space<vmem>>, %arg4: memref<8x128xf32, #tpu.memory_space<vmem>>) attributes {dimension_semantics = [#tpu.dimension_semantics<parallel>, #tpu.dimension_semantics<arbitrary>], iteration_bounds = array<i64: 1, 1>, scalar_prefetch = 0 : i64, scratch_operands = 0 : i64, tpu.core_type = #tpu.core_type<tc>, window_params = [{transform_indices = @transform_0, window_bounds = array<i64: 16, 128>}, {transform_indices = @transform_1, window_bounds = array<i64: 16, 128>}, {transform_indices = @transform_2, window_bounds = array<i64: 8, 128>}]} {
    %c0_i32 = arith.constant 0 : i32
    %0 = arith.cmpi eq, %arg1, %c0_i32 : i32
    %1 = arith.extui %0 : i1 to i32
    %c0_i32_0 = arith.constant 0 : i32
    %2 = arith.cmpi ne, %1, %c0_i32_0 : i32
    scf.if %2 {
      %cst_10 = arith.constant 0.000000e+00 : f32
      %18 = vector.broadcast %cst_10 : f32 to vector<8x128xf32>
      %c0_11 = arith.constant 0 : index
      %c0_12 = arith.constant 0 : index
      %19 = vector.load %arg4[%c0_11, %c0_12] : memref<8x128xf32, #tpu.memory_space<vmem>>, vector<8x128xf32>
      tpu.vector_store %arg4[%c0_11, %c0_12], %18 {strides = array<i32>} : memref<8x128xf32, #tpu.memory_space<vmem>>, vector<8x128xf32>,
    } else {
    }
    %c0 = arith.constant 0 : index
    %c0_1 = arith.constant 0 : index
    %3 = vector.load %arg2[%c0, %c0_1] : memref<16x128xf32, #tpu.memory_space<vmem>>, vector<16x128xf32>
    %c0_2 = arith.constant 0 : index
    %c0_3 = arith.constant 0 : index
    %4 = vector.load %arg3[%c0_2, %c0_3] : memref<16x128xf32, #tpu.memory_space<vmem>>, vector<16x128xf32>
    %5 = arith.subf %3, %4 : vector<16x128xf32>
    %6 = math.absf %5 : vector<16x128xf32>
    %cst = arith.constant 9.99999993E-9 : f32
    %7 = vector.broadcast %cst : f32 to vector<16x128xf32>
    %8 = arith.addf %6, %7 : vector<16x128xf32>
    %9 = math.log %8 : vector<16x128xf32>
    %cst_4 = arith.constant 1.400000e+00 : f32
    %10 = vector.broadcast %cst_4 : f32 to vector<16x128xf32>
    %11 = arith.mulf %10, %9 : vector<16x128xf32>
    %12 = math.exp %11 : vector<16x128xf32>
    %c0_5 = arith.constant 0 : index
    %c0_6 = arith.constant 0 : index
    %13 = vector.load %arg4[%c0_5, %c0_6] : memref<8x128xf32, #tpu.memory_space<vmem>>, vector<8x128xf32>
    %14 = vector.shape_cast %12 : vector<16x128xf32> to vector<2x8x128xf32>
    %cst_7 = arith.constant dense<0.000000e+00> : vector<8x128xf32>
    %15 = vector.multi_reduction <add>, %14, %cst_7 [0] : vector<2x8x128xf32> to vector<8x128xf32>
    %16 = arith.addf %13, %15 : vector<8x128xf32>
    %c0_8 = arith.constant 0 : index
    %c0_9 = arith.constant 0 : index
    %17 = vector.load %arg4[%c0_8, %c0_9] : memref<8x128xf32, #tpu.memory_space<vmem>>, vector<8x128xf32>
    tpu.vector_store %arg4[%c0_8, %c0_9], %16 {strides = array<i32>} : memref<8x128xf32, #tpu.memory_space<vmem>>, vector<8x128xf32>,
    return
  }
  func.func @transform_0(%arg0: i32, %arg1: i32) -> (i32, i32) {
    %c1_i32 = arith.constant 1 : i32
    %0 = arith.muli %arg0, %c1_i32 : i32
    %1 = arith.addi %0, %arg1 : i32
    %c0_i32 = arith.constant 0 : i32
    %c0_i32_0 = arith.constant 0 : i32
    return %1, %c0_i32 : i32, i32
  }
  func.func @transform_1(%arg0: i32, %arg1: i32) -> (i32, i32) {
    %c1_i32 = arith.constant 1 : i32
    %0 = arith.muli %arg0, %c1_i32 : i32
    %1 = arith.addi %0, %arg1 : i32
    %c0_i32 = arith.constant 0 : i32
    %c0_i32_0 = arith.constant 0 : i32
    return %1, %c0_i32 : i32, i32
  }
  func.func @transform_2(%arg0: i32, %arg1: i32) -> (i32, i32) {
    %c0_i32 = arith.constant 0 : i32
    %c0_i32_0 = arith.constant 0 : i32
    return %arg0, %c0_i32 : i32, i32
  }
}

</mosaic_0001>

<llo_original>
// kernel: tpu_custom_call.1
$region0: #{tpu_custom_call.1}
  #allocation0 [shape = 'u32[]', space=smem, size = 0x4, offset = 0x4, fixed_abs, tag = 'smem constant byte address 0x4 - core index']
  #allocation1 [shape = 'u32[72,128]{1,0:T(1,128)}', space=vmem, size = 0x9000, scoped, tag = 'internal scratch']
  %s0 = inlined_call_operand.hbm [shape: f32[16,128], index: 0, kind: input, shape index: {}]
  %s1 = inlined_call_operand.hbm [shape: f32[16,128], index: 1, kind: input, shape index: {}]
  %s2 = inlined_call_operand.hbm [shape: f32[8,128], index: 2, kind: output, shape index: {}]
  %s3 = sld [smem:[#allocation0]]
  $region30: #{tpu_custom_call.1} parent=0
    _
  %s5 = ssub.s32 1, %s3
  %s6 = scalar_select 0, %s5, %s3
  $region1: #{tpu_custom_call.1} parent=0
    #allocation2 [shape = 'u8[8192]{0}', space=vmem, size = 0x2000, scoped, tag = 'input window, operand 0, single buffered']
    #allocation3 [shape = 's32[1]{0}', space=sflag, size = 0x4, scoped, tag = 'scoped memory for tpu_custom_call.1']
    #allocation4 [shape = 's32[1]{0}', space=sflag, size = 0x4, scoped, tag = 'scoped memory for tpu_custom_call.1']
    #allocation5 [shape = 'u8[8192]{0}', space=vmem, size = 0x2000, scoped, tag = 'input window, operand 1, single buffered']
    #allocation6 [shape = 's32[1]{0}', space=sflag, size = 0x4, scoped, tag = 'scoped memory for tpu_custom_call.1']
    #allocation7 [shape = 'u8[4096]{0}', space=vmem, size = 0x1000, scoped, tag = 'output window, operand 0, single buffered']
    %7 = vsyncpa [#allocation3], 0
    %8 = vsyncpa [#allocation6], 0
    %9 = vsyncpa [#allocation4], 0
    // Predicated region
    $region2: #{tpu_custom_call.1} parent=1 // pred_check
      _
    $region3: #{tpu_custom_call.1} parent=1 // pred_check_branch
      %11 = sbr.rel (0) target = $region5
    $region4: #{tpu_custom_call.1} parent=1 // pred_region
      %s12 = sadd.s32 0, 0
      %s13 = smul.u32 2, %s12
      %15 = vsyncadd [#allocation3], 0
      %s16 = smul.addr %s13, 8
      %s17 = scalar_lea.hbm %s0, %s16
      %s18 = sshll.u32 %s17, 4
      %s19 = int_to_ptr.hbm [resolvable:$true] %s18
      %s20 = sshll.u32 [#allocation2], 4
      %s21 = int_to_ptr.vmem [resolvable:$true] %s20
      %26 = dma.hbm_to_vmem [thread:$0]  %s19, 256, %s21, [#allocation3], 128, 128, 8
    $region5: #{tpu_custom_call.1} parent=1 // pred_fallthru
      _
    // Predicated region
    $region6: #{tpu_custom_call.1} parent=1 // pred_check
      _
    $region7: #{tpu_custom_call.1} parent=1 // pred_check_branch
      %28 = sbr.rel (0) target = $region9
    $region8: #{tpu_custom_call.1} parent=1 // pred_region
      %s29 = sadd.s32 0, 0
      %s30 = smul.u32 2, %s29
      %32 = vsyncadd [#allocation6], 0
      %s33 = smul.addr %s30, 8
      %s34 = scalar_lea.hbm %s1, %s33
      %s35 = sshll.u32 %s34, 4
      %s36 = int_to_ptr.hbm [resolvable:$true] %s35
      %s37 = sshll.u32 [#allocation5], 4
      %s38 = int_to_ptr.vmem [resolvable:$true] %s37
      %43 = dma.hbm_to_vmem [thread:$0]  %s36, 256, %s38, [#allocation6], 128, 128, 8
    $region9: #{tpu_custom_call.1} parent=1 // pred_fallthru
      _
    // Predicated region
    $region10: #{tpu_custom_call.1} parent=1 // pred_check
      _
    $region11: #{tpu_custom_call.1} parent=1 // pred_check_branch
      %45 = sbr.rel (0) target = $region13
    $region12: #{tpu_custom_call.1} parent=1 // pred_region
      %47 = dma.done [#allocation3], 256
    $region13: #{tpu_custom_call.1} parent=1 // pred_fallthru
      _
    // Predicated region
    $region14: #{tpu_custom_call.1} parent=1 // pred_check
      _
    $region15: #{tpu_custom_call.1} parent=1 // pred_check_branch
      %49 = sbr.rel (0) target = $region17
    $region16: #{tpu_custom_call.1} parent=1 // pred_region
      %51 = dma.done [#allocation6], 256
    $region17: #{tpu_custom_call.1} parent=1 // pred_fallthru
      _
    %s52 = sadd.s32 0, 0
    %s53 = smul.u32 2, %s52
    %s54 = sadd.s32 0, 0
    %s55 = smul.u32 2, %s54
    %p56 = scmp.eq.s32.totalorder 0, 0
    // Predicated region
    $region18: #{tpu_custom_call.1} parent=1 // pred_check
      %p57 = pneg %p56
    $region19: #{tpu_custom_call.1} parent=1 // pred_check_branch
      %59 = sbr.rel (%p57) target = $region21
    $region20: #{tpu_custom_call.1} parent=1 // pred_region
      %60 = vst [vmem:[#allocation7] sm:$0xff] 0.0
    $region21: #{tpu_custom_call.1} parent=1 // pred_fallthru
      _
    %v61 = vld [vmem:[#allocation2] sm:$0xff]
    %v62 = vld [vmem:[#allocation2 + $0x8] sm:$0xff]
    %v63 = vld [vmem:[#allocation5] sm:$0xff]
    %v64 = vld [vmem:[#allocation5 + $0x8] sm:$0xff]
    %v65 = vsub.f32 %v61, %v63
    %v66 = vsub.f32 %v62, %v64
    %v67 = vand.u32 2147483647, %v65
    %v68 = vand.u32 2147483647, %v66
    %v69 = vadd.f32 %v67, 1e-08
    %v70 = vadd.f32 %v68, 1e-08
    %v71 = vlog2.pop %v69
    %v72 = vmul.f32 %v71, 0.6931472
    %v73 = vlog2.pop %v70
    %v74 = vmul.f32 %v73, 0.6931472
    %v75 = vmul.f32 %v72, 1.4
    %v76 = vmul.f32 %v74, 1.4
    %v77 = vmul.f32 %v75, 1.442695
    %v78 = vpow.pop %v77
    %v79 = vmul.f32 %v76, 1.442695
    %v80 = vpow.pop %v79
    %v81 = vld [vmem:[#allocation7] sm:$0xff]
    %v82 = vadd.f32 %v78, %v80
    %v83 = vadd.f32 %v81, %v82
    %84 = vst [vmem:[#allocation7] sm:$0xff] %v83
    // Predicated region
    $region22: #{tpu_custom_call.1} parent=1 // pred_check
      _
    $region23: #{tpu_custom_call.1} parent=1 // pred_check_branch
      %86 = sbr.rel (0) target = $region25
    $region24: #{tpu_custom_call.1} parent=1 // pred_region
      %88 = vsyncadd [#allocation4], 0
      %s90 = sshll.u32 [#allocation7], 4
      %s91 = int_to_ptr.vmem [resolvable:$true] %s90
      %s92 = sshll.u32 %s2, 4
      %s93 = int_to_ptr.hbm [resolvable:$true] %s92
      %95 = dma.vmem_to_hbm [thread:$0]  %s91, 128, %s93, [#allocation4]
    $region25: #{tpu_custom_call.1} parent=1 // pred_fallthru
      _
    // Predicated region
    $region26: #{tpu_custom_call.1} parent=1 // pred_check
      _
    $region27: #{tpu_custom_call.1} parent=1 // pred_check_branch
      %97 = sbr.rel (0) target = $region29
    $region28: #{tpu_custom_call.1} parent=1 // pred_region
      %99 = dma.done [#allocation4], 128
    $region29: #{tpu_custom_call.1} parent=1 // pred_fallthru
      _
    %100 = vsyncpa [#allocation3], 1
    %101 = vsyncpa [#allocation6], 1
    %102 = vsyncpa [#allocation4], 1

</llo_original>
